<compile_context>
chip_gen: v7x
topology: tpu7x:2x2x1
jax: 0.10.0
libtpu: 0.0.40
codegen_flags: <defaults>
</compile_context>

<pallas_src>
import functools

import numpy as np
import jax
import jax.numpy as jnp
from jax import lax
from jax.experimental import pallas as pl
from jax.experimental.pallas import tpu as pltpu


def _round_up(x, m):
    return (x + m - 1) // m * m


def basic_block_kernel(xm_ref, xl_ref, xr_ref, w1_ref, w2_ref,
                       s1_ref, b1_ref, s2_ref, b2_ref, o_ref,
                       *, lt, seq_len):
    """One (batch sample, L-tile) of the BasicBlock forward.

    xm_ref : (lt, Cp)     current L-tile of the input (channels-last, lane-dense)
    xl_ref : (hb, Cp)     block containing the 2 rows just left of the tile
    xr_ref : (hb, Cp)     block containing the 2 rows just right of the tile
    w1_ref : (3*Cp, Cp)   conv1 weights, taps fused along the contraction dim
    w2_ref : (3*Cp, Cp)   conv2 weights, taps fused
    s*_ref : (1, Cp)      folded BN scale (f32)
    b*_ref : (1, Cp)      folded BN shift (f32)
    o_ref  : (lt, Cp)     output tile (f32)
    """
    l = pl.program_id(1)
    s0 = l * lt                          # global position of the first output row

    hb = xl_ref.shape[0]
    left2 = xl_ref[hb - 2:hb, :]         # rows at positions s0-2, s0-1 (if any)
    right2 = xr_ref[0:2, :]              # rows at positions s0+lt, s0+lt+1 (if any)

    # Extended tile: row r <-> global position s0 - 2 + r.  Out-of-sequence rows
    # (including clamped halo content at the sequence ends) are zeroed -- this is
    # exactly the conv zero padding, so no padded HBM copy and no VMEM scratch.
    xe = jnp.concatenate([left2, xm_ref[...], right2], axis=0)       # (lt+4, Cp)
    pos_x = lax.broadcasted_iota(jnp.int32, (lt + 4, 1), 0) + (s0 - 2)
    xe = jnp.where((pos_x >= 0) & (pos_x < seq_len), xe, jnp.zeros_like(xe))

    # conv1 (k=3, pad=1, stride=1) as ONE matmul with K = 3*Cp ("im2col-lite").
    # h row j <-> output position s0 - 1 + j (one extra row each side so conv2
    # needs no halo of its own).
    x_taps = jnp.concatenate([xe[0:lt + 2], xe[1:lt + 3], xe[2:lt + 4]], axis=1)
    h = jnp.dot(x_taps, w1_ref[...], preferred_element_type=jnp.float32)

    # bn1 (folded, inference form) + relu, in f32.
    h = jnp.maximum(h * s1_ref[...] + b1_ref[...], 0.0)

    # conv2's zero padding: rows of h outside [0, seq_len) must be exactly zero.
    pos_h = lax.broadcasted_iota(jnp.int32, (lt + 2, 1), 0) + (s0 - 1)
    h = jnp.where((pos_h >= 0) & (pos_h < seq_len), h, 0.0)

    # conv2, also fused into a single matmul.
    h = h.astype(w2_ref.dtype)
    h_taps = jnp.concatenate([h[0:lt], h[1:lt + 1], h[2:lt + 2]], axis=1)
    o = jnp.dot(h_taps, w2_ref[...], preferred_element_type=jnp.float32)

    # bn2 (folded) + residual + relu.
    o = o * s2_ref[...] + b2_ref[...]
    o = jnp.maximum(o + xe[2:lt + 2].astype(jnp.float32), 0.0)
    o_ref[...] = o.astype(o_ref.dtype)


def basic_block_pallas(x_ncl, w1, w2, gamma1, beta1, mean1, var1,
                       gamma2, beta2, mean2, var2, eps=1e-5,
                       compute_dtype=jnp.float32, l_tile=None):
    """BasicBlock forward (eval-mode BN). x_ncl: (N, C, L). Returns (N, C, L) f32."""
    N, C, L = x_ncl.shape
    Cout = w1.shape[0]
    assert Cout == C, "BasicBlock with downsample=None requires inplanes == planes"
    assert w1.shape == (C, C, 3) and w2.shape == (C, C, 3)
    assert L >= 2

    # Lane-dense channels: pad C to a multiple of 128 (zero channels are inert
    # through conv / folded-BN / relu / residual and are sliced off afterwards).
    Cp = _round_up(C, 128)

    # L tile: largest multiple of 8 that divides L and is <= 512 (single tile for
    # small L). The 2-row halo is fetched from the neighbouring 8-row blocks.
    if l_tile is not None:
        LT = int(l_tile)
        assert L % LT == 0 and (LT == L or LT % 8 == 0)
    elif L <= 512:
        LT = L
    else:
        LT = L
        for cand in range(512, 7, -8):
            if L % cand == 0:
                LT = cand
                break
    num_l = L // LT
    HB = min(8, L)                     # halo block height (full L if L < 8)
    lt_blocks = LT // HB
    n_hblk = -(-L // HB)

    # Fold BN parameters into per-channel scale/shift (inference semantics).
    def fold_bn(gamma, beta, mean, var):
        inv = gamma / jnp.sqrt(var + eps)
        pad = ((0, 0), (0, Cp - C))
        scale = jnp.pad(inv.reshape(1, C).astype(jnp.float32), pad)
        shift = jnp.pad((beta - mean * inv).reshape(1, C).astype(jnp.float32), pad)
        return scale, shift

    s1p, b1p = fold_bn(gamma1, beta1, mean1, var1)
    s2p, b2p = fold_bn(gamma2, beta2, mean2, var2)

    # PyTorch conv weight (Cout, Cin, 3) -> fused (3*Cp, Cp): row k*Cp + c holds
    # the weight of input channel c at tap k, so one matmul covers all 3 taps.
    def fuse_w(w):
        wt = jnp.transpose(w, (2, 1, 0))                      # (3, Cin, Cout)
        wt = jnp.pad(wt, ((0, 0), (0, Cp - C), (0, Cp - C)))  # (3, Cp, Cp)
        return wt.reshape(3 * Cp, Cp).astype(compute_dtype)

    w1f = fuse_w(w1)
    w2f = fuse_w(w2)

    # NCL -> NLC (channels on lanes). No length padding in HBM.
    x_nlc = jnp.transpose(x_ncl, (0, 2, 1)).astype(compute_dtype)
    x_nlc = jnp.pad(x_nlc, ((0, 0), (0, 0), (0, Cp - C)))

    act_bytes = int(np.dtype(compute_dtype).itemsize)
    cost = pl.CostEstimate(
        flops=2 * 2 * N * L * (3 * Cp) * Cp,
        transcendentals=0,
        bytes_accessed=N * L * Cp * act_bytes + N * L * Cp * 4
                       + 2 * 3 * Cp * Cp * act_bytes + 4 * Cp * 4)

    kernel = functools.partial(basic_block_kernel, lt=LT, seq_len=L)

    out_nlc = pl.pallas_call(
        kernel,
        out_shape=jax.ShapeDtypeStruct((N, L, Cp), jnp.float32),
        grid=(N, num_l),
        in_specs=[
            # current L-tile (batch dim squeezed -> kernel sees 2-D refs)
            pl.BlockSpec((None, LT, Cp), lambda b, l: (b, l, 0)),
            # 8-row block just left / right of the tile (clamped at the ends;
            # out-of-sequence rows are masked to zero inside the kernel)
            pl.BlockSpec((None, HB, Cp),
                         lambda b, l: (b, jnp.maximum(l * lt_blocks - 1, 0), 0)),
            pl.BlockSpec((None, HB, Cp),
                         lambda b, l: (b, jnp.minimum((l + 1) * lt_blocks,
                                                      n_hblk - 1), 0)),
            pl.BlockSpec((3 * Cp, Cp), lambda b, l: (0, 0)),   # w1 (fused taps)
            pl.BlockSpec((3 * Cp, Cp), lambda b, l: (0, 0)),   # w2 (fused taps)
            pl.BlockSpec((1, Cp), lambda b, l: (0, 0)),        # bn1 scale
            pl.BlockSpec((1, Cp), lambda b, l: (0, 0)),        # bn1 shift
            pl.BlockSpec((1, Cp), lambda b, l: (0, 0)),        # bn2 scale
            pl.BlockSpec((1, Cp), lambda b, l: (0, 0)),        # bn2 shift
        ],
        out_specs=pl.BlockSpec((None, LT, Cp), lambda b, l: (b, l, 0)),
        compiler_params=pltpu.CompilerParams(
            dimension_semantics=("parallel", "parallel"),
            vmem_limit_bytes=48 * 1024 * 1024),
        cost_estimate=cost,
    )(x_nlc, x_nlc, x_nlc, w1f, w2f, s1p, b1p, s2p, b2p)

    return jnp.transpose(out_nlc[..., :C], (0, 2, 1))   # back to NCL


def basic_block_reference(x, w1, w2, gamma1, beta1, mean1, var1,
                          gamma2, beta2, mean2, var2, eps=1e-5):
    """Plain-JAX reference in NCL layout (matches PyTorch eval-mode forward)."""
    def conv(x_, w_):
        return lax.conv_general_dilated(
            x_, w_, window_strides=(1,), padding=((1, 1),),
            dimension_numbers=("NCH", "OIH", "NCH"))

    def bn(x_, g, b, m, v):
        return (x_ - m[None, :, None]) / jnp.sqrt(v[None, :, None] + eps) \
            * g[None, :, None] + b[None, :, None]

    out = jnp.maximum(bn(conv(x, w1), gamma1, beta1, mean1, var1), 0.0)
    out = bn(conv(out, w2), gamma2, beta2, mean2, var2)
    return jnp.maximum(out + x, 0.0)


if __name__ == "__main__":
    def make_inputs(key, N, C, L):
        keys = jax.random.split(key, 11)
        x = jax.random.normal(keys[0], (N, C, L), dtype=jnp.float32)
        w1 = jax.random.normal(keys[1], (C, C, 3), dtype=jnp.float32) * 0.3
        w2 = jax.random.normal(keys[2], (C, C, 3), dtype=jnp.float32) * 0.3
        gamma1 = 1.0 + 0.1 * jax.random.normal(keys[3], (C,), dtype=jnp.float32)
        beta1 = 0.1 * jax.random.normal(keys[4], (C,), dtype=jnp.float32)
        mean1 = 0.1 * jax.random.normal(keys[5], (C,), dtype=jnp.float32)
        var1 = 1.0 + 0.1 * jnp.abs(jax.random.normal(keys[6], (C,), dtype=jnp.float32))
        gamma2 = 1.0 + 0.1 * jax.random.normal(keys[7], (C,), dtype=jnp.float32)
        beta2 = 0.1 * jax.random.normal(keys[8], (C,), dtype=jnp.float32)
        mean2 = 0.1 * jax.random.normal(keys[9], (C,), dtype=jnp.float32)
        var2 = 1.0 + 0.1 * jnp.abs(jax.random.normal(keys[10], (C,), dtype=jnp.float32))
        return (x, w1, w2, gamma1, beta1, mean1, var1, gamma2, beta2, mean2, var2)

    key = jax.random.PRNGKey(0)
    k1, k2, k3 = jax.random.split(key, 3)

    # Case 1: toy shape (single L tile), f32.
    args1 = make_inputs(k1, 2, 4, 16)
    out1 = jax.block_until_ready(basic_block_pallas(*args1))
    ref1 = basic_block_reference(*args1)
    assert out1.shape == (2, 4, 16)
    assert jnp.allclose(out1, ref1, atol=2e-4, rtol=2e-4), "case1 mismatch"

    # Case 2: multiple L tiles (exercises halo blocks + boundary masks), f32.
    args2 = make_inputs(k2, 2, 4, 64)
    out2 = jax.block_until_ready(basic_block_pallas(*args2, l_tile=16))
    ref2 = basic_block_reference(*args2)
    assert jnp.allclose(out2, ref2, atol=2e-4, rtol=2e-4), "case2 mismatch"

    # Case 3: bf16 activations/weights in HBM and on the MXU (f32 accumulate/BN).
    args3 = make_inputs(k3, 2, 4, 64)
    out3 = jax.block_until_ready(
        basic_block_pallas(*args3, compute_dtype=jnp.bfloat16, l_tile=32))
    ref3 = basic_block_reference(*args3)
    assert jnp.allclose(out3, ref3, atol=0.15, rtol=0.05), "case3 mismatch"

    print("KERNEL_OK")
</pallas_src>

<mosaic_0001>
module attributes {stable_mosaic.version = 11 : i64} {
  func.func @basic_block_kernel(%arg0: i32, %arg1: i32, %arg2: memref<1x16x128xf32, #tpu.memory_space<vmem>>, %arg3: memref<1x8x128xf32, #tpu.memory_space<vmem>>, %arg4: memref<1x8x128xf32, #tpu.memory_space<vmem>>, %arg5: memref<384x128xf32, #tpu.memory_space<vmem>>, %arg6: memref<384x128xf32, #tpu.memory_space<vmem>>, %arg7: memref<1x128xf32, #tpu.memory_space<vmem>>, %arg8: memref<1x128xf32, #tpu.memory_space<vmem>>, %arg9: memref<1x128xf32, #tpu.memory_space<vmem>>, %arg10: memref<1x128xf32, #tpu.memory_space<vmem>>, %arg11: memref<1x16x128xf32, #tpu.memory_space<vmem>>) attributes {dimension_semantics = [#tpu.dimension_semantics<parallel>, #tpu.dimension_semantics<parallel>], iteration_bounds = array<i64: 2, 1>, scalar_prefetch = 0 : i64, scratch_operands = 0 : i64, tpu.core_type = #tpu.core_type<tc>, window_params = [{transform_indices = @transform_0, window_bounds = array<i64: 1, 16, 128>}, {transform_indices = @transform_1, window_bounds = array<i64: 1, 8, 128>}, {transform_indices = @transform_2, window_bounds = array<i64: 1, 8, 128>}, {pipeline_mode = #tpu.pipeline_mode<synchronous>, transform_indices = @transform_3, window_bounds = array<i64: 384, 128>}, {pipeline_mode = #tpu.pipeline_mode<synchronous>, transform_indices = @transform_4, window_bounds = array<i64: 384, 128>}, {pipeline_mode = #tpu.pipeline_mode<synchronous>, transform_indices = @transform_5, window_bounds = array<i64: 1, 128>}, {pipeline_mode = #tpu.pipeline_mode<synchronous>, transform_indices = @transform_6, window_bounds = array<i64: 1, 128>}, {pipeline_mode = #tpu.pipeline_mode<synchronous>, transform_indices = @transform_7, window_bounds = array<i64: 1, 128>}, {pipeline_mode = #tpu.pipeline_mode<synchronous>, transform_indices = @transform_8, window_bounds = array<i64: 1, 128>}, {transform_indices = @transform_9, window_bounds = array<i64: 1, 16, 128>}]} {
    %c16_i32 = arith.constant 16 : i32
    %0 = arith.muli %arg1, %c16_i32 : i32
    %c0 = arith.constant 0 : index
    %c6 = arith.constant 6 : index
    %c0_0 = arith.constant 0 : index
    %1 = vector.load %arg3[%c0, %c6, %c0_0] : memref<1x8x128xf32, #tpu.memory_space<vmem>>, vector<1x2x128xf32>
    %2 = vector.shape_cast %1 : vector<1x2x128xf32> to vector<2x128xf32>
    %c0_1 = arith.constant 0 : index
    %c0_2 = arith.constant 0 : index
    %c0_3 = arith.constant 0 : index
    %3 = vector.load %arg4[%c0_1, %c0_2, %c0_3] : memref<1x8x128xf32, #tpu.memory_space<vmem>>, vector<1x2x128xf32>
    %4 = vector.shape_cast %3 : vector<1x2x128xf32> to vector<2x128xf32>
    %c0_4 = arith.constant 0 : index
    %c0_5 = arith.constant 0 : index
    %c0_6 = arith.constant 0 : index
    %5 = vector.load %arg2[%c0_4, %c0_5, %c0_6] : memref<1x16x128xf32, #tpu.memory_space<vmem>>, vector<1x16x128xf32>
    %6 = vector.shape_cast %5 : vector<1x16x128xf32> to vector<16x128xf32>
    %7 = tpu.concatenate %2, %6, %4 in 0 : vector<2x128xf32>, vector<16x128xf32>, vector<2x128xf32> -> vector<20x128xf32>
    %8 = tpu.iota {dimensions = array<i32: 0>} : vector<20x1xi32>
    %c2_i32 = arith.constant 2 : i32
    %9 = arith.subi %0, %c2_i32 : i32
    %10 = vector.broadcast %9 : i32 to vector<20x1xi32>
    %11 = arith.addi %8, %10 : vector<20x1xi32>
    %c0_i32 = arith.constant 0 : i32
    %12 = vector.broadcast %c0_i32 : i32 to vector<20x1xi32>
    %13 = arith.cmpi sge, %11, %12 : vector<20x1xi32>
    %c16_i32_7 = arith.constant 16 : i32
    %14 = vector.broadcast %c16_i32_7 : i32 to vector<20x1xi32>
    %15 = arith.cmpi slt, %11, %14 : vector<20x1xi32>
    %16 = arith.andi %13, %15 : vector<20x1xi1>
    %cst = arith.constant 0.000000e+00 : f32
    %17 = vector.broadcast %cst : f32 to vector<20x128xf32>
    %18 = vector.shape_cast %16 : vector<20x1xi1> to vector<20x1xi1>
    %19 = vector.broadcast %18 : vector<20x1xi1> to vector<20x128xi1>
    %20 = arith.select %19, %7, %17 : vector<20x128xi1>, vector<20x128xf32>
    %21 = vector.extract_strided_slice %20 {offsets = [0, 0], sizes = [18, 128], strides = [1, 1]} : vector<20x128xf32> to vector<18x128xf32>
    %22 = vector.extract_strided_slice %20 {offsets = [1, 0], sizes = [18, 128], strides = [1, 1]} : vector<20x128xf32> to vector<18x128xf32>
    %23 = vector.extract_strided_slice %20 {offsets = [2, 0], sizes = [18, 128], strides = [1, 1]} : vector<20x128xf32> to vector<18x128xf32>
    %24 = tpu.concatenate %21, %22, %23 in 1 : vector<18x128xf32>, vector<18x128xf32>, vector<18x128xf32> -> vector<18x384xf32>
    %c0_8 = arith.constant 0 : index
    %c0_9 = arith.constant 0 : index
    %25 = vector.load %arg5[%c0_8, %c0_9] : memref<384x128xf32, #tpu.memory_space<vmem>>, vector<384x128xf32>
    %cst_10 = arith.constant dense<0.000000e+00> : vector<18x128xf32>
    %26 = tpu.matmul %24, %25, %cst_10 {dimension_numbers = #tpu.dot_dimension_numbers<[1], [0], [0], [1], [0, 0, 1, 1], [], []>} : vector<18x384xf32>, vector<384x128xf32>, vector<18x128xf32> -> vector<18x128xf32>
    %c0_11 = arith.constant 0 : index
    %c0_12 = arith.constant 0 : index
    %27 = vector.load %arg7[%c0_11, %c0_12] : memref<1x128xf32, #tpu.memory_space<vmem>>, vector<1x128xf32>
    %28 = vector.broadcast %27 : vector<1x128xf32> to vector<18x128xf32>
    %29 = arith.mulf %26, %28 : vector<18x128xf32>
    %c0_13 = arith.constant 0 : index
    %c0_14 = arith.constant 0 : index
    %30 = vector.load %arg8[%c0_13, %c0_14] : memref<1x128xf32, #tpu.memory_space<vmem>>, vector<1x128xf32>
    %31 = vector.broadcast %30 : vector<1x128xf32> to vector<18x128xf32>
    %32 = arith.addf %29, %31 : vector<18x128xf32>
    %cst_15 = arith.constant 0.000000e+00 : f32
    %33 = vector.broadcast %cst_15 : f32 to vector<18x128xf32>
    %34 = arith.maximumf %32, %33 : vector<18x128xf32>
    %35 = tpu.iota {dimensions = array<i32: 0>} : vector<18x1xi32>
    %c1_i32 = arith.constant 1 : i32
    %36 = arith.subi %0, %c1_i32 : i32
    %37 = vector.broadcast %36 : i32 to vector<18x1xi32>
    %38 = arith.addi %35, %37 : vector<18x1xi32>
    %c0_i32_16 = arith.constant 0 : i32
    %39 = vector.broadcast %c0_i32_16 : i32 to vector<18x1xi32>
    %40 = arith.cmpi sge, %38, %39 : vector<18x1xi32>
    %c16_i32_17 = arith.constant 16 : i32
    %41 = vector.broadcast %c16_i32_17 : i32 to vector<18x1xi32>
    %42 = arith.cmpi slt, %38, %41 : vector<18x1xi32>
    %43 = arith.andi %40, %42 : vector<18x1xi1>
    %cst_18 = arith.constant 0.000000e+00 : f32
    %44 = vector.shape_cast %43 : vector<18x1xi1> to vector<18x1xi1>
    %45 = vector.broadcast %44 : vector<18x1xi1> to vector<18x128xi1>
    %46 = vector.broadcast %cst_18 : f32 to vector<18x128xf32>
    %47 = arith.select %45, %34, %46 : vector<18x128xi1>, vector<18x128xf32>
    %48 = vector.extract_strided_slice %47 {offsets = [0, 0], sizes = [16, 128], strides = [1, 1]} : vector<18x128xf32> to vector<16x128xf32>
    %49 = vector.extract_strided_slice %47 {offsets = [1, 0], sizes = [16, 128], strides = [1, 1]} : vector<18x128xf32> to vector<16x128xf32>
    %50 = vector.extract_strided_slice %47 {offsets = [2, 0], sizes = [16, 128], strides = [1, 1]} : vector<18x128xf32> to vector<16x128xf32>
    %51 = tpu.concatenate %48, %49, %50 in 1 : vector<16x128xf32>, vector<16x128xf32>, vector<16x128xf32> -> vector<16x384xf32>
    %c0_19 = arith.constant 0 : index
    %c0_20 = arith.constant 0 : index
    %52 = vector.load %arg6[%c0_19, %c0_20] : memref<384x128xf32, #tpu.memory_space<vmem>>, vector<384x128xf32>
    %cst_21 = arith.constant dense<0.000000e+00> : vector<16x128xf32>
    %53 = tpu.matmul %51, %52, %cst_21 {dimension_numbers = #tpu.dot_dimension_numbers<[1], [0], [0], [1], [0, 0, 1, 1], [], []>} : vector<16x384xf32>, vector<384x128xf32>, vector<16x128xf32> -> vector<16x128xf32>
    %c0_22 = arith.constant 0 : index
    %c0_23 = arith.constant 0 : index
    %54 = vector.load %arg9[%c0_22, %c0_23] : memref<1x128xf32, #tpu.memory_space<vmem>>, vector<1x128xf32>
    %55 = vector.broadcast %54 : vector<1x128xf32> to vector<16x128xf32>
    %56 = arith.mulf %53, %55 : vector<16x128xf32>
    %c0_24 = arith.constant 0 : index
    %c0_25 = arith.constant 0 : index
    %57 = vector.load %arg10[%c0_24, %c0_25] : memref<1x128xf32, #tpu.memory_space<vmem>>, vector<1x128xf32>
    %58 = vector.broadcast %57 : vector<1x128xf32> to vector<16x128xf32>
    %59 = arith.addf %56, %58 : vector<16x128xf32>
    %60 = vector.extract_strided_slice %20 {offsets = [2, 0], sizes = [16, 128], strides = [1, 1]} : vector<20x128xf32> to vector<16x128xf32>
    %61 = arith.addf %59, %60 : vector<16x128xf32>
    %cst_26 = arith.constant 0.000000e+00 : f32
    %62 = vector.broadcast %cst_26 : f32 to vector<16x128xf32>
    %63 = arith.maximumf %61, %62 : vector<16x128xf32>
    %c0_27 = arith.constant 0 : index
    %c0_28 = arith.constant 0 : index
    %c0_29 = arith.constant 0 : index
    %64 = vector.load %arg11[%c0_27, %c0_28, %c0_29] : memref<1x16x128xf32, #tpu.memory_space<vmem>>, vector<1x16x128xf32>
    %65 = vector.shape_cast %64 : vector<1x16x128xf32> to vector<16x128xf32>
    %66 = vector.shape_cast %63 : vector<16x128xf32> to vector<1x16x128xf32>
    tpu.vector_store %arg11[%c0_27, %c0_28, %c0_29], %66 {strides = array<i32>} : memref<1x16x128xf32, #tpu.memory_space<vmem>>, vector<1x16x128xf32>,
    return
  }
  func.func @transform_0(%arg0: i32, %arg1: i32) -> (i32, i32, i32) {
    %c0_i32 = arith.constant 0 : i32
    %c0_i32_0 = arith.constant 0 : i32
    return %arg0, %arg1, %c0_i32 : i32, i32, i32
  }
  func.func @transform_1(%arg0: i32, %arg1: i32) -> (i32, i32, i32) {
    %c2_i32 = arith.constant 2 : i32
    %0 = arith.muli %arg1, %c2_i32 : i32
    %c1_i32 = arith.constant 1 : i32
    %1 = arith.subi %0, %c1_i32 : i32
    %c0_i32 = arith.constant 0 : i32
    %2 = arith.maxsi %1, %c0_i32 : i32
    %c0_i32_0 = arith.constant 0 : i32
    %c0_i32_1 = arith.constant 0 : i32
    return %arg0, %2, %c0_i32_0 : i32, i32, i32
  }
  func.func @transform_2(%arg0: i32, %arg1: i32) -> (i32, i32, i32) {
    %c1_i32 = arith.constant 1 : i32
    %0 = arith.addi %arg1, %c1_i32 : i32
    %c2_i32 = arith.constant 2 : i32
    %1 = arith.muli %0, %c2_i32 : i32
    %c1_i32_0 = arith.constant 1 : i32
    %2 = arith.minsi %1, %c1_i32_0 : i32
    %c0_i32 = arith.constant 0 : i32
    %c0_i32_1 = arith.constant 0 : i32
    return %arg0, %2, %c0_i32 : i32, i32, i32
  }
  func.func @transform_3(%arg0: i32, %arg1: i32) -> (i32, i32) {
    %c0_i32 = arith.constant 0 : i32
    %c0_i32_0 = arith.constant 0 : i32
    %c0_i32_1 = arith.constant 0 : i32
    return %c0_i32, %c0_i32_0 : i32, i32
  }
  func.func @transform_4(%arg0: i32, %arg1: i32) -> (i32, i32) {
    %c0_i32 = arith.constant 0 : i32
    %c0_i32_0 = arith.constant 0 : i32
    %c0_i32_1 = arith.constant 0 : i32
    return %c0_i32, %c0_i32_0 : i32, i32
  }
  func.func @transform_5(%arg0: i32, %arg1: i32) -> (i32, i32) {
    %c0_i32 = arith.constant 0 : i32
    %c0_i32_0 = arith.constant 0 : i32
    %c0_i32_1 = arith.constant 0 : i32
    return %c0_i32, %c0_i32_0 : i32, i32
  }
  func.func @transform_6(%arg0: i32, %arg1: i32) -> (i32, i32) {
    %c0_i32 = arith.constant 0 : i32
    %c0_i32_0 = arith.constant 0 : i32
    %c0_i32_1 = arith.constant 0 : i32
    return %c0_i32, %c0_i32_0 : i32, i32
  }
  func.func @transform_7(%arg0: i32, %arg1: i32) -> (i32, i32) {
    %c0_i32 = arith.constant 0 : i32
    %c0_i32_0 = arith.constant 0 : i32
    %c0_i32_1 = arith.constant 0 : i32
    return %c0_i32, %c0_i32_0 : i32, i32
  }
  func.func @transform_8(%arg0: i32, %arg1: i32) -> (i32, i32) {
    %c0_i32 = arith.constant 0 : i32
    %c0_i32_0 = arith.constant 0 : i32
    %c0_i32_1 = arith.constant 0 : i32
    return %c0_i32, %c0_i32_0 : i32, i32
  }
  func.func @transform_9(%arg0: i32, %arg1: i32) -> (i32, i32, i32) {
    %c0_i32 = arith.constant 0 : i32
    %c0_i32_0 = arith.constant 0 : i32
    return %arg0, %arg1, %c0_i32 : i32, i32, i32
  }
}

</mosaic_0001>

<llo_original>
// kernel: tpu_custom_call.1
$region0: #{tpu_custom_call.1}
  #allocation0 [shape = 'u32[]', space=smem, size = 0x4, offset = 0x4, fixed_abs, tag = 'smem constant byte address 0x4 - core index']
  #allocation1 [shape = 'u32[144,128]{1,0:T(1,128)}', space=vmem, size = 0x12000, scoped, tag = 'internal scratch']
  %s0 = inlined_call_operand.hbm [shape: f32[2,16,128], index: 0, kind: input, shape index: {}]
  %s1 = inlined_call_operand.hbm [shape: f32[2,16,128], index: 1, kind: input, shape index: {}]
  %s2 = inlined_call_operand.hbm [shape: f32[2,16,128], index: 2, kind: input, shape index: {}]
  %s3 = inlined_call_operand.hbm [shape: f32[384,128], index: 3, kind: input, shape index: {}]
  %s4 = inlined_call_operand.hbm [shape: f32[384,128], index: 4, kind: input, shape index: {}]
  %s5 = inlined_call_operand.vmem [shape: f32[1,128], index: 5, kind: input, shape index: {}]
  %s6 = inlined_call_operand.vmem [shape: f32[1,128], index: 6, kind: input, shape index: {}]
  %s7 = inlined_call_operand.vmem [shape: f32[1,128], index: 7, kind: input, shape index: {}]
  %s8 = inlined_call_operand.vmem [shape: f32[1,128], index: 8, kind: input, shape index: {}]
  %s9 = inlined_call_operand.hbm [shape: f32[2,16,128], index: 9, kind: output, shape index: {}]
  %s10 = sld [smem:[#allocation0]]
  $region89: #{tpu_custom_call.1} parent=0
    _
  %s12 = ssub.s32 1, %s10
  %s13 = scalar_select 0, %s12, %s10
  $region1: #{tpu_custom_call.1} parent=0
    #allocation2 [shape = 'u8[16384]{0}', space=vmem, size = 0x4000, scoped, tag = 'input window, operand 0']
    #allocation3 [shape = 's32[2]{0}', space=sflag, size = 0x8, scoped, tag = 'scoped memory for tpu_custom_call.1']
    #allocation4 [shape = 's32[2]{0}', space=sflag, size = 0x8, scoped, tag = 'scoped memory for tpu_custom_call.1']
    #allocation5 [shape = 'u8[8192]{0}', space=vmem, size = 0x2000, scoped, tag = 'input window, operand 1']
    #allocation6 [shape = 's32[2]{0}', space=sflag, size = 0x8, scoped, tag = 'scoped memory for tpu_custom_call.1']
    #allocation7 [shape = 'u8[8192]{0}', space=vmem, size = 0x2000, scoped, tag = 'input window, operand 2']
    #allocation8 [shape = 'u8[196608]{0}', space=vmem, size = 0x30000, scoped, tag = 'input window, operand 3, single buffered']
    #allocation9 [shape = 's32[1]{0}', space=sflag, size = 0x4, scoped, tag = 'scoped memory for tpu_custom_call.1']
    #allocation10 [shape = 'u8[196608]{0}', space=vmem, size = 0x30000, scoped, tag = 'input window, operand 4, single buffered']
    #allocation11 [shape = 'u8[16384]{0}', space=vmem, size = 0x4000, scoped, tag = 'output window, operand 0']
    %14 = vsyncpa [#allocation3], 0
    %s15 = scalar_lea.sflag [#allocation3], 1
    %16 = vsyncpa %s15, 0
    %17 = vsyncpa [#allocation6], 0
    %s18 = scalar_lea.sflag [#allocation6], 1
    %19 = vsyncpa %s18, 0
    %20 = vsyncpa [#allocation9], 0
    %21 = vsyncpa [#allocation4], 0
    %s22 = scalar_lea.sflag [#allocation4], 1
    %23 = vsyncpa %s22, 0
    loop: start=0, step=1, limit=4
    $region2: #{tpu_custom_call.1} parent=1 // loop_pre_header
      _
    $region3: #{tpu_custom_call.1} parent=1 // loop_header
      %s25 = sphi 0, %s29
      %p26 = scmp.ge.s32.totalorder %s25, 4
      %s32 = sphi 0, %s44
      %s33 = sphi 0, %s40
      %s34 = sphi 0, %s32
      %s35 = sphi 0, %s33
      %s36 = sphi 0, %s34
      %s37 = sphi 0, %s35
      %s49 = sphi 0, %s51
      %s52 = sphi 0, %s49
      %s53 = sphi 0, %s52
      %s69 = sphi 0, %s53
      %s85 = sphi 0, %s87
      %s88 = sphi 0, %s85
      %s89 = sphi 0, %s88
      %s105 = sphi 0, %s89
      %s121 = sphi 0, %s123
      %s124 = sphi 0, %s121
      %s125 = sphi 0, %s124
      %s141 = sphi 0, %s125
      %s145 = sphi 0, %s145
      %s147 = sphi 0, %s145
      %s148 = sphi 0, %s147
      %s162 = sphi 0, %s148
      %s166 = sphi 0, %s166
      %s168 = sphi 0, %s166
      %s169 = sphi 0, %s168
      %s183 = sphi 0, %s169
      %s187 = sphi 0, %s187
      %s189 = sphi 0, %s187
      %s190 = sphi 0, %s189
      %s204 = sphi 0, %s190
      %s208 = sphi 0, %s208
      %s210 = sphi 0, %s208
      %s211 = sphi 0, %s210
      %s225 = sphi 0, %s211
      %s229 = sphi 0, %s229
      %s231 = sphi 0, %s229
      %s232 = sphi 0, %s231
      %s246 = sphi 0, %s232
      %s250 = sphi 0, %s250
      %s252 = sphi 0, %s250
      %s253 = sphi 0, %s252
      %s267 = sphi 0, %s253
      %s275 = sphi 0, %s277
      %s278 = sphi 0, %s275
      %s279 = sphi 0, %s278
      %s295 = sphi 0, %s279
    $region4: #{tpu_custom_call.1} parent=1 // loop_header_branch
      %28 = sbr.rel (%p26) target = $region8
    $region5: #{tpu_custom_call.1} parent=1 // loop_body
      %s30 = ssub.s32 %s25, 1
      %s31 = ssub.s32 %s25, 2
      %s38 = sadd.s32 1, %s33
      %p39 = scmp.ge.s32.totalorder %s38, 1
      %s40 = scalar_select %p39, 0, %s38
      %s41 = sadd.s32 1, %s32
      %s42 = scalar_select %p39, %s41, %s32
      %p43 = scmp.ge.s32.totalorder %s42, 2
      %s44 = scalar_select %p43, 0, %s42
      %s45 = ssub.s32 %s32, %s44
      %s46 = ssub.s32 %s33, %s40
      %s47 = sor.u32 %s45, %s46
      %p48 = scmp.eq.s32.totalorder %s47, 0
      %s50 = sadd.s32 %s49, 1
      %s51 = scalar_select %p48, %s49, %s50
      %p54 = pneg %p48
      %p55 = scmp.eq.s32.totalorder %s25, 1
      %p56 = por %p54, %p55
      %p57 = scmp.ne.s32.totalorder %s49, %s52
      %p58 = scmp.eq.s32.totalorder %s25, 0
      %p59 = por %p57, %p58
      %p60 = scmp.ne.s32.totalorder %s49, %s52
      %p61 = scmp.eq.s32.totalorder %s30, 1
      %p62 = por %p60, %p61
      %p63 = scmp.ne.s32.totalorder %s52, %s53
      %p64 = scmp.eq.s32.totalorder %s30, 0
      %p65 = por %p63, %p64
      %p66 = scmp.ne.s32.totalorder %s52, %s53
      %p67 = scmp.eq.s32.totalorder %s31, 1
      %p68 = por %p66, %p67
      %p70 = scmp.ne.s32.totalorder %s53, %s69
      %p71 = scmp.eq.s32.totalorder %s31, 0
      %p72 = por %p70, %p71
      %s73 = smul.u32 %s33, 2
      %s74 = ssub.s32 %s73, 1
      %p75 = scmp.gt.s32.totalorder %s74, 0
      %s76 = scalar_select %p75, %s74, 0
      %s77 = smul.u32 %s40, 2
      %s78 = ssub.s32 %s77, 1
      %p79 = scmp.gt.s32.totalorder %s78, 0
      %s80 = scalar_select %p79, %s78, 0
      %s81 = ssub.s32 %s32, %s44
      %s82 = ssub.s32 %s76, %s80
      %s83 = sor.u32 %s81, %s82
      %p84 = scmp.eq.s32.totalorder %s83, 0
      %s86 = sadd.s32 %s85, 1
      %s87 = scalar_select %p84, %s85, %s86
      %p90 = pneg %p84
      %p91 = scmp.eq.s32.totalorder %s25, 1
      %p92 = por %p90, %p91
      %p93 = scmp.ne.s32.totalorder %s85, %s88
      %p94 = scmp.eq.s32.totalorder %s25, 0
      %p95 = por %p93, %p94
      %p96 = scmp.ne.s32.totalorder %s85, %s88
      %p97 = scmp.eq.s32.totalorder %s30, 1
      %p98 = por %p96, %p97
      %p99 = scmp.ne.s32.totalorder %s88, %s89
      %p100 = scmp.eq.s32.totalorder %s30, 0
      %p101 = por %p99, %p100
      %p102 = scmp.ne.s32.totalorder %s88, %s89
      %p103 = scmp.eq.s32.totalorder %s31, 1
      %p104 = por %p102, %p103
      %p106 = scmp.ne.s32.totalorder %s89, %s105
      %p107 = scmp.eq.s32.totalorder %s31, 0
      %p108 = por %p106, %p107
      %s109 = sadd.s32 %s33, 1
      %s110 = smul.u32 %s109, 2
      %p111 = scmp.lt.s32.totalorder %s110, 1
      %s112 = scalar_select %p111, %s110, 1
      %s113 = sadd.s32 %s40, 1
      %s114 = smul.u32 %s113, 2
      %p115 = scmp.lt.s32.totalorder %s114, 1
      %s116 = scalar_select %p115, %s114, 1
      %s117 = ssub.s32 %s32, %s44
      %s118 = ssub.s32 %s112, %s116
      %s119 = sor.u32 %s117, %s118
      %p120 = scmp.eq.s32.totalorder %s119, 0
      %s122 = sadd.s32 %s121, 1
      %s123 = scalar_select %p120, %s121, %s122
      %p126 = pneg %p120
      %p127 = scmp.eq.s32.totalorder %s25, 1
      %p128 = por %p126, %p127
      %p129 = scmp.ne.s32.totalorder %s121, %s124
      %p130 = scmp.eq.s32.totalorder %s25, 0
      %p131 = por %p129, %p130
      %p132 = scmp.ne.s32.totalorder %s121, %s124
      %p133 = scmp.eq.s32.totalorder %s30, 1
      %p134 = por %p132, %p133
      %p135 = scmp.ne.s32.totalorder %s124, %s125
      %p136 = scmp.eq.s32.totalorder %s30, 0
      %p137 = por %p135, %p136
      %p138 = scmp.ne.s32.totalorder %s124, %s125
      %p139 = scmp.eq.s32.totalorder %s31, 1
      %p140 = por %p138, %p139
      %p142 = scmp.ne.s32.totalorder %s125, %s141
      %p143 = scmp.eq.s32.totalorder %s31, 0
      %p144 = por %p142, %p143
      %s146 = sadd.s32 %s145, 1
      %p149 = scmp.eq.s32.totalorder %s25, 1
      %p150 = scmp.ne.s32.totalorder %s145, %s147
      %p151 = scmp.eq.s32.totalorder %s25, 0
      %p152 = por %p150, %p151
      %p153 = scmp.ne.s32.totalorder %s145, %s147
      %p154 = scmp.eq.s32.totalorder %s30, 1
      %p155 = por %p153, %p154
      %p156 = scmp.ne.s32.totalorder %s147, %s148
      %p157 = scmp.eq.s32.totalorder %s30, 0
      %p158 = por %p156, %p157
      %p159 = scmp.ne.s32.totalorder %s147, %s148
      %p160 = scmp.eq.s32.totalorder %s31, 1
      %p161 = por %p159, %p160
      %p163 = scmp.ne.s32.totalorder %s148, %s162
      %p164 = scmp.eq.s32.totalorder %s31, 0
      %p165 = por %p163, %p164
      %s167 = sadd.s32 %s166, 1
      %p170 = scmp.eq.s32.totalorder %s25, 1
      %p171 = scmp.ne.s32.totalorder %s166, %s168
      %p172 = scmp.eq.s32.totalorder %s25, 0
      %p173 = por %p171, %p172
      %p174 = scmp.ne.s32.totalorder %s166, %s168
      %p175 = scmp.eq.s32.totalorder %s30, 1
      %p176 = por %p174, %p175
      %p177 = scmp.ne.s32.totalorder %s168, %s169
      %p178 = scmp.eq.s32.totalorder %s30, 0
      %p179 = por %p177, %p178
      %p180 = scmp.ne.s32.totalorder %s168, %s169
      %p181 = scmp.eq.s32.totalorder %s31, 1
      %p182 = por %p180, %p181
      %p184 = scmp.ne.s32.totalorder %s169, %s183
      %p185 = scmp.eq.s32.totalorder %s31, 0
      %p186 = por %p184, %p185
      %s188 = sadd.s32 %s187, 1
      %p191 = scmp.eq.s32.totalorder %s25, 1
      %p192 = scmp.ne.s32.totalorder %s187, %s189
      %p193 = scmp.eq.s32.totalorder %s25, 0
      %p194 = por %p192, %p193
      %p195 = scmp.ne.s32.totalorder %s187, %s189
      %p196 = scmp.eq.s32.totalorder %s30, 1
      %p197 = por %p195, %p196
      %p198 = scmp.ne.s32.totalorder %s189, %s190
      %p199 = scmp.eq.s32.totalorder %s30, 0
      %p200 = por %p198, %p199
      %p201 = scmp.ne.s32.totalorder %s189, %s190
      %p202 = scmp.eq.s32.totalorder %s31, 1
      %p203 = por %p201, %p202
      %p205 = scmp.ne.s32.totalorder %s190, %s204
      %p206 = scmp.eq.s32.totalorder %s31, 0
      %p207 = por %p205, %p206
      %s209 = sadd.s32 %s208, 1
      %p212 = scmp.eq.s32.totalorder %s25, 1
      %p213 = scmp.ne.s32.totalorder %s208, %s210
      %p214 = scmp.eq.s32.totalorder %s25, 0
      %p215 = por %p213, %p214
      %p216 = scmp.ne.s32.totalorder %s208, %s210
      %p217 = scmp.eq.s32.totalorder %s30, 1
      %p218 = por %p216, %p217
      %p219 = scmp.ne.s32.totalorder %s210, %s211
      %p220 = scmp.eq.s32.totalorder %s30, 0
      %p221 = por %p219, %p220
      %p222 = scmp.ne.s32.totalorder %s210, %s211
      %p223 = scmp.eq.s32.totalorder %s31, 1
      %p224 = por %p222, %p223
      %p226 = scmp.ne.s32.totalorder %s211, %s225
      %p227 = scmp.eq.s32.totalorder %s31, 0
      %p228 = por %p226, %p227
      %s230 = sadd.s32 %s229, 1
      %p233 = scmp.eq.s32.totalorder %s25, 1
      %p234 = scmp.ne.s32.totalorder %s229, %s231
      %p235 = scmp.eq.s32.totalorder %s25, 0
      %p236 = por %p234, %p235
      %p237 = scmp.ne.s32.totalorder %s229, %s231
      %p238 = scmp.eq.s32.totalorder %s30, 1
      %p239 = por %p237, %p238
      %p240 = scmp.ne.s32.totalorder %s231, %s232
      %p241 = scmp.eq.s32.totalorder %s30, 0
      %p242 = por %p240, %p241
      %p243 = scmp.ne.s32.totalorder %s231, %s232
      %p244 = scmp.eq.s32.totalorder %s31, 1
      %p245 = por %p243, %p244
      %p247 = scmp.ne.s32.totalorder %s232, %s246
      %p248 = scmp.eq.s32.totalorder %s31, 0
      %p249 = por %p247, %p248
      %s251 = sadd.s32 %s250, 1
      %p254 = scmp.eq.s32.totalorder %s25, 1
      %p255 = scmp.ne.s32.totalorder %s250, %s252
      %p256 = scmp.eq.s32.totalorder %s25, 0
      %p257 = por %p255, %p256
      %p258 = scmp.ne.s32.totalorder %s250, %s252
      %p259 = scmp.eq.s32.totalorder %s30, 1
      %p260 = por %p258, %p259
      %p261 = scmp.ne.s32.totalorder %s252, %s253
      %p262 = scmp.eq.s32.totalorder %s30, 0
      %p263 = por %p261, %p262
      %p264 = scmp.ne.s32.totalorder %s252, %s253
      %p265 = scmp.eq.s32.totalorder %s31, 1
      %p266 = por %p264, %p265
      %p268 = scmp.ne.s32.totalorder %s253, %s267
      %p269 = scmp.eq.s32.totalorder %s31, 0
      %p270 = por %p268, %p269
      %s271 = ssub.s32 %s32, %s44
      %s272 = ssub.s32 %s33, %s40
      %s273 = sor.u32 %s271, %s272
      %p274 = scmp.eq.s32.totalorder %s273, 0
      %s276 = sadd.s32 %s275, 1
      %s277 = scalar_select %p274, %s275, %s276
      %p280 = pneg %p274
      %p281 = scmp.eq.s32.totalorder %s25, 1
      %p282 = por %p280, %p281
      %p283 = scmp.ne.s32.totalorder %s275, %s278
      %p284 = scmp.eq.s32.totalorder %s25, 0
      %p285 = por %p283, %p284
      %p286 = scmp.ne.s32.totalorder %s275, %s278
      %p287 = scmp.eq.s32.totalorder %s30, 1
      %p288 = por %p286, %p287
      %p289 = scmp.ne.s32.totalorder %s278, %s279
      %p290 = scmp.eq.s32.totalorder %s30, 0
      %p291 = por %p289, %p290
      %p292 = scmp.ne.s32.totalorder %s278, %s279
      %p293 = scmp.eq.s32.totalorder %s31, 1
      %p294 = por %p292, %p293
      %p296 = scmp.ne.s32.totalorder %s279, %s295
      %p297 = scmp.eq.s32.totalorder %s31, 0
      %p298 = por %p296, %p297
      %p299 = scmp.le.s32.totalorder 1, %s25
      %p300 = scmp.lt.s32.totalorder %s25, 3
      %p301 = pnand %p299, %p300
      %p302 = pneg %p301
      // Predicated region
      $region9: #{tpu_custom_call.1} parent=5 // pred_check
        _
      $region10: #{tpu_custom_call.1} parent=5 // pred_check_branch
        %304 = sbr.rel (%p301) target = $region12
      $region11: #{tpu_custom_call.1} parent=5 // pred_region
        %s305 = ssub.s32 %s25, 1
        // Predicated region
        $region13: #{tpu_custom_call.1} parent=11 // pred_check
          %p306 = pneg %p158
        $region14: #{tpu_custom_call.1} parent=11 // pred_check_branch
          %308 = sbr.rel (%p306) target = $region16
        $region15: #{tpu_custom_call.1} parent=11 // pred_region
          %s310 = ssub.s32 6144, 6144
          %311 = vsyncadd [#allocation9], %s310
          %s312 = sshll.u32 [#allocation8], 4
          %s313 = int_to_ptr.vmem [resolvable:$true] %s312
          %318 = dma.hbm_to_vmem [thread:$0]  %s3, 6144, %s313, [#allocation9], 128, 128, 8
        $region16: #{tpu_custom_call.1} parent=11 // pred_fallthru
          _
        // Predicated region
        $region17: #{tpu_custom_call.1} parent=11 // pred_check
          %p319 = pneg %p179
        $region18: #{tpu_custom_call.1} parent=11 // pred_check_branch
          %321 = sbr.rel (%p319) target = $region20
        $region19: #{tpu_custom_call.1} parent=11 // pred_region
          %s323 = ssub.s32 6144, 6144
          %324 = vsyncadd [#allocation9], %s323
          %s325 = sshll.u32 [#allocation10], 4
          %s326 = int_to_ptr.vmem [resolvable:$true] %s325
          %331 = dma.hbm_to_vmem [thread:$0]  %s4, 6144, %s326, [#allocation9], 128, 128, 8
        $region20: #{tpu_custom_call.1} parent=11 // pred_fallthru
          _
        // Predicated region
        $region21: #{tpu_custom_call.1} parent=11 // pred_check
          %p332 = pneg %p200
        $region22: #{tpu_custom_call.1} parent=11 // pred_check_branch
          %334 = sbr.rel (%p332) target = $region24
        $region23: #{tpu_custom_call.1} parent=11 // pred_region
          _
        $region24: #{tpu_custom_call.1} parent=11 // pred_fallthru
          _
        // Predicated region
        $region25: #{tpu_custom_call.1} parent=11 // pred_check
          %p335 = pneg %p221
        $region26: #{tpu_custom_call.1} parent=11 // pred_check_branch
          %337 = sbr.rel (%p335) target = $region28
        $region27: #{tpu_custom_call.1} parent=11 // pred_region
          _
        $region28: #{tpu_custom_call.1} parent=11 // pred_fallthru
          _
        // Predicated region
        $region29: #{tpu_custom_call.1} parent=11 // pred_check
          %p338 = pneg %p242
        $region30: #{tpu_custom_call.1} parent=11 // pred_check_branch
          %340 = sbr.rel (%p338) target = $region32
        $region31: #{tpu_custom_call.1} parent=11 // pred_region
          _
        $region32: #{tpu_custom_call.1} parent=11 // pred_fallthru
          _
        // Predicated region
        $region33: #{tpu_custom_call.1} parent=11 // pred_check
          %p341 = pneg %p263
        $region34: #{tpu_custom_call.1} parent=11 // pred_check_branch
          %343 = sbr.rel (%p341) target = $region36
        $region35: #{tpu_custom_call.1} parent=11 // pred_region
          _
        $region36: #{tpu_custom_call.1} parent=11 // pred_fallthru
          _
      $region12: #{tpu_custom_call.1} parent=5 // pred_fallthru
        _
      %p344 = scmp.lt.s32.totalorder %s25, 2
      // Predicated region
      $region37: #{tpu_custom_call.1} parent=5 // pred_check
        %p345 = pneg %p344
      $region38: #{tpu_custom_call.1} parent=5 // pred_check_branch
        %347 = sbr.rel (%p345) target = $region40
      $region39: #{tpu_custom_call.1} parent=5 // pred_region
        // Predicated region
        $region41: #{tpu_custom_call.1} parent=39 // pred_check
          %p348 = pneg %p59
        $region42: #{tpu_custom_call.1} parent=39 // pred_check_branch
          %350 = sbr.rel (%p348) target = $region44
        $region43: #{tpu_custom_call.1} parent=39 // pred_region
          %s351 = sand.u32 %s49, 1
          %s352 = scalar_lea.sflag [#allocation3], %s351
          %s353 = sand.u32 %s49, 1
          %s354 = smul.addr %s353, 16
          %s355 = scalar_lea.vmem [#allocation2], %s354
          %s356 = smul.u32 2, %s33
          %s358 = ssub.s32 256, 256
          %359 = vsyncadd %s352, %s358
          %s360 = smul.addr %s32, 2
          %s361 = sadd.s32 %s356, %s360
          %s362 = smul.addr %s361, 128
          %s363 = scalar_lea.hbm %s0, %s362
          %s364 = sshll.u32 %s355, 4
          %s365 = int_to_ptr.vmem [resolvable:$true] %s364
          %370 = dma.hbm_to_vmem [thread:$0]  %s363, 256, %s365, %s352, 128, 128, 8
        $region44: #{tpu_custom_call.1} parent=39 // pred_fallthru
          _
        // Predicated region
        $region45: #{tpu_custom_call.1} parent=39 // pred_check
          %p371 = pneg %p95
        $region46: #{tpu_custom_call.1} parent=39 // pred_check_branch
          %373 = sbr.rel (%p371) target = $region48
        $region47: #{tpu_custom_call.1} parent=39 // pred_region
          %s374 = sand.u32 %s25, 1
          %s375 = scalar_lea.sflag [#allocation6], %s374
          %s376 = sand.u32 %s85, 1
          %s377 = smul.addr %s376, 8
          %s378 = scalar_lea.vmem [#allocation5], %s377
          %s379 = smul.u32 %s33, 2
          %s380 = ssub.s32 %s379, 1
          %p381 = scmp.gt.s32.totalorder %s380, 0
          %s382 = scalar_select %p381, %s380, 0
          %s384 = ssub.s32 128, 128
          %385 = vsyncadd %s375, %s384
          %s386 = smul.addr %s32, 2
          %s387 = sadd.s32 %s382, %s386
          %s388 = smul.addr %s387, 128
          %s389 = scalar_lea.hbm %s1, %s388
          %s391 = sshll.u32 %s378, 4
          %s392 = int_to_ptr.vmem [resolvable:$true] %s391
          %394 = dma.hbm_to_vmem [thread:$0]  %s389, 128, %s392, %s375
        $region48: #{tpu_custom_call.1} parent=39 // pred_fallthru
          _
        // Predicated region
        $region49: #{tpu_custom_call.1} parent=39 // pred_check
          %p395 = pneg %p131
        $region50: #{tpu_custom_call.1} parent=39 // pred_check_branch
          %397 = sbr.rel (%p395) target = $region52
        $region51: #{tpu_custom_call.1} parent=39 // pred_region
          %s398 = sand.u32 %s25, 1
          %s399 = scalar_lea.sflag [#allocation6], %s398
          %s400 = sand.u32 %s121, 1
          %s401 = smul.addr %s400, 8
          %s402 = scalar_lea.vmem [#allocation7], %s401
          %s403 = sadd.s32 %s33, 1
          %s404 = smul.u32 %s403, 2
          %p405 = scmp.lt.s32.totalorder %s404, 1
          %s406 = scalar_select %p405, %s404, 1
          %s408 = ssub.s32 128, 128
          %409 = vsyncadd %s399, %s408
          %s410 = smul.addr %s32, 2
          %s411 = sadd.s32 %s406, %s410
          %s412 = smul.addr %s411, 128
          %s413 = scalar_lea.hbm %s2, %s412
          %s415 = sshll.u32 %s402, 4
          %s416 = int_to_ptr.vmem [resolvable:$true] %s415
          %418 = dma.hbm_to_vmem [thread:$0]  %s413, 128, %s416, %s399
        $region52: #{tpu_custom_call.1} parent=39 // pred_fallthru
          _
      $region40: #{tpu_custom_call.1} parent=5 // pred_fallthru
        _
      %p419 = scmp.le.s32.totalorder 1, %s25
      %p420 = scmp.lt.s32.totalorder %s25, 3
      %p421 = pnand %p419, %p420
      %p422 = pneg %p421
      // Predicated region
      $region53: #{tpu_custom_call.1} parent=5 // pred_check
        _
      $region54: #{tpu_custom_call.1} parent=5 // pred_check_branch
        %424 = sbr.rel (%p421) target = $region56
      $region55: #{tpu_custom_call.1} parent=5 // pred_region
        %s425 = ssub.s32 %s25, 1
        %s426 = sand.u32 %s52, 1
        %s427 = scalar_lea.sflag [#allocation3], %s426
        %s428 = sand.u32 %s52, 1
        %s429 = smul.addr %s428, 16
        %s430 = scalar_lea.vmem [#allocation2], %s429
        // Predicated region
        $region57: #{tpu_custom_call.1} parent=55 // pred_check
          %p431 = pneg %p65
        $region58: #{tpu_custom_call.1} parent=55 // pred_check_branch
          %433 = sbr.rel (%p431) target = $region60
        $region59: #{tpu_custom_call.1} parent=55 // pred_region
          %434 = dma.done %s427, 256
        $region60: #{tpu_custom_call.1} parent=55 // pred_fallthru
          _
        %s435 = sand.u32 %s30, 1
        %s436 = scalar_lea.sflag [#allocation6], %s435
        %s437 = sand.u32 %s88, 1
        %s438 = smul.addr %s437, 8
        %s439 = scalar_lea.vmem [#allocation5], %s438
        // Predicated region
        $region61: #{tpu_custom_call.1} parent=55 // pred_check
          %p440 = pneg %p101
        $region62: #{tpu_custom_call.1} parent=55 // pred_check_branch
          %442 = sbr.rel (%p440) target = $region64
        $region63: #{tpu_custom_call.1} parent=55 // pred_region
          %443 = dma.done %s436, 128
        $region64: #{tpu_custom_call.1} parent=55 // pred_fallthru
          _
        %s444 = sand.u32 %s30, 1
        %s445 = scalar_lea.sflag [#allocation6], %s444
        %s446 = sand.u32 %s124, 1
        %s447 = smul.addr %s446, 8
        %s448 = scalar_lea.vmem [#allocation7], %s447
        // Predicated region
        $region65: #{tpu_custom_call.1} parent=55 // pred_check
          %p449 = pneg %p137
        $region66: #{tpu_custom_call.1} parent=55 // pred_check_branch
          %451 = sbr.rel (%p449) target = $region68
        $region67: #{tpu_custom_call.1} parent=55 // pred_region
          %452 = dma.done %s445, 128
        $region68: #{tpu_custom_call.1} parent=55 // pred_fallthru
          _
        // Predicated region
        $region69: #{tpu_custom_call.1} parent=55 // pred_check
          %p453 = pneg %p158
        $region70: #{tpu_custom_call.1} parent=55 // pred_check_branch
          %455 = sbr.rel (%p453) target = $region72
        $region71: #{tpu_custom_call.1} parent=55 // pred_region
          %456 = dma.done [#allocation9], 6144
        $region72: #{tpu_custom_call.1} parent=55 // pred_fallthru
          _
        // Predicated region
        $region73: #{tpu_custom_call.1} parent=55 // pred_check
          %p457 = pneg %p179
        $region74: #{tpu_custom_call.1} parent=55 // pred_check_branch
          %459 = sbr.rel (%p457) target = $region76
        $region75: #{tpu_custom_call.1} parent=55 // pred_region
          %460 = dma.done [#allocation9], 6144
        $region76: #{tpu_custom_call.1} parent=55 // pred_fallthru
          _
        %s461 = sand.u32 %s52, 1
        %s462 = scalar_lea.sflag [#allocation3], %s461
        %s463 = sand.u32 %s52, 1
        %s464 = smul.addr %s463, 16
        %s465 = scalar_lea.vmem [#allocation2], %s464
        %p466 = pneg %p65
        %p467 = pneg %p62
        %s468 = sand.u32 %s30, 1
        %s469 = scalar_lea.sflag [#allocation6], %s468
        %s470 = sand.u32 %s88, 1
        %s471 = smul.addr %s470, 8
        %s472 = scalar_lea.vmem [#allocation5], %s471
        %p473 = pneg %p101
        %p474 = pneg %p98
        %s475 = sand.u32 %s30, 1
        %s476 = scalar_lea.sflag [#allocation6], %s475
        %s477 = sand.u32 %s124, 1
        %s478 = smul.addr %s477, 8
        %s479 = scalar_lea.vmem [#allocation7], %s478
        %p480 = pneg %p137
        %p481 = pneg %p134
        %p482 = pneg %p158
        %p483 = pneg %p155
        %p484 = pneg %p179
        %p485 = pneg %p176
        %p486 = pneg %p200
        %p487 = pneg %p197
        %p488 = pneg %p221
        %p489 = pneg %p218
        %p490 = pneg %p242
        %p491 = pneg %p239
        %p492 = pneg %p263
        %p493 = pneg %p260
        %p494 = pneg %p291
        %p495 = pneg %p288
        %s496 = sand.u32 %s278, 1
        %s497 = scalar_lea.sflag [#allocation4], %s496
        %s498 = sand.u32 %s278, 1
        %s499 = smul.addr %s498, 16
        %s500 = scalar_lea.vmem [#allocation11], %s499
        %s501 = smul.u32 2, %s35
        %s502 = smul.u32 %s35, 2
        %s503 = ssub.s32 %s502, 1
        %p504 = scmp.gt.s32.totalorder %s503, 0
        %s505 = scalar_select %p504, %s503, 0
        %s506 = sadd.s32 %s35, 1
        %s507 = smul.u32 %s506, 2
        %p508 = scmp.lt.s32.totalorder %s507, 1
        %s509 = scalar_select %p508, %s507, 1
        %s510 = smul.u32 2, %s35
        %s511 = smul.u32 %s35, 16
        %v512 = vld [vmem:[%s439 + $0x6] sm:$0x3]
        %v513 = vld [vmem:[%s448] sm:$0x3]
        %v514 = vld [vmem:[%s430] sm:$0xff]
        %v515 = vld [vmem:[%s430 + $0x8] sm:$0xff]
        %vm518 = vcmask 1041408
        %v519 = vrot.slane %v514, 6
        %v520 = vrot.slane %v515, 6
        %v521 = vsel %vm518, %v519, %v520
        %v526 = vrot.slane %v513, 6
        %v528 = vsel %vm518, %v512, %v519
        %v529 = vsel %vm518, %v520, %v526
        %v530 = vlaneseq
        %v531 = vshrl.u32 %v530, 7
        %v532 = vadd.s32 %v531, 8
        %v533 = vadd.s32 %v531, 16
        %s534 = ssub.s32 %s511, 2
        %v535 = vstv %s534
        %v536 = vadd.s32 %v531, %v535
        %v537 = vadd.s32 %v532, %v535
        %v538 = vadd.s32 %v533, %v535
        %vm539 = vcmp.ge.s32.totalorder %v536, 0
        %vm540 = vcmp.ge.s32.totalorder %v537, 0
        %vm541 = vcmp.ge.s32.totalorder %v538, 0
        %vm542 = vcmp.lt.s32.totalorder %v536, 16
        %vm543 = vcmp.lt.s32.totalorder %v537, 16
        %vm544 = vcmp.lt.s32.totalorder %v538, 16
        %vm545 = vmand %vm539, %vm542
        %vm546 = vmand %vm540, %vm543
        %vm547 = vmand %vm541, %vm544
        %v548 = vsel %vm545, 1, 0
        %v549 = vsel %vm546, 1, 0
        %v550 = vsel %vm547, 1, 0
        %vm551 = vcmp.eq.s32.totalorder %v548, 1
        %vm552 = vcmp.eq.s32.totalorder %v549, 1
        %vm553 = vcmp.eq.s32.totalorder %v550, 1
        %v554 = vsel %vm551, %v528, 0.0
        %v555 = vsel %vm552, %v521, 0.0
        %v556 = vsel %vm553, %v529, 0.0
        %vm560 = vcmask 1046528
        %v561 = vrot.slane %v554, 1
        %v562 = vrot.slane %v555, 1
        %v563 = vsel %vm560, %v561, %v562
        %v564 = vrot.slane %v556, 1
        %v565 = vsel %vm560, %v562, %v564
        %vm569 = vcmask 1045504
        %v570 = vrot.slane %v554, 2
        %v571 = vrot.slane %v555, 2
        %v572 = vsel %vm569, %v570, %v571
        %v573 = vrot.slane %v556, 2
        %v574 = vsel %vm569, %v571, %v573
        %v578 = vld [vmem:[#allocation8] sm:$0xff]
        %v579 = vld [vmem:[#allocation8 + $0x8] sm:$0xff]
        %v580 = vld [vmem:[#allocation8 + $0x10] sm:$0xff]
        %v581 = vld [vmem:[#allocation8 + $0x18] sm:$0xff]
        %v582 = vld [vmem:[#allocation8 + $0x20] sm:$0xff]
        %v583 = vld [vmem:[#allocation8 + $0x28] sm:$0xff]
        %v584 = vld [vmem:[#allocation8 + $0x30] sm:$0xff]
        %v585 = vld [vmem:[#allocation8 + $0x38] sm:$0xff]
        %v586 = vld [vmem:[#allocation8 + $0x40] sm:$0xff]
        %v587 = vld [vmem:[#allocation8 + $0x48] sm:$0xff]
        %v588 = vld [vmem:[#allocation8 + $0x50] sm:$0xff]
        %v589 = vld [vmem:[#allocation8 + $0x58] sm:$0xff]
        %v590 = vld [vmem:[#allocation8 + $0x60] sm:$0xff]
        %v591 = vld [vmem:[#allocation8 + $0x68] sm:$0xff]
        %v592 = vld [vmem:[#allocation8 + $0x70] sm:$0xff]
        %v593 = vld [vmem:[#allocation8 + $0x78] sm:$0xff]
        %v594 = vld [vmem:[#allocation8 + $0x80] sm:$0xff]
        %v595 = vld [vmem:[#allocation8 + $0x88] sm:$0xff]
        %v596 = vld [vmem:[#allocation8 + $0x90] sm:$0xff]
        %v597 = vld [vmem:[#allocation8 + $0x98] sm:$0xff]
        %v598 = vld [vmem:[#allocation8 + $0xa0] sm:$0xff]
        %v599 = vld [vmem:[#allocation8 + $0xa8] sm:$0xff]
        %v600 = vld [vmem:[#allocation8 + $0xb0] sm:$0xff]
        %v601 = vld [vmem:[#allocation8 + $0xb8] sm:$0xff]
        %v602 = vld [vmem:[#allocation8 + $0xc0] sm:$0xff]
        %v603 = vld [vmem:[#allocation8 + $0xc8] sm:$0xff]
        %v604 = vld [vmem:[#allocation8 + $0xd0] sm:$0xff]
        %v605 = vld [vmem:[#allocation8 + $0xd8] sm:$0xff]
        %v606 = vld [vmem:[#allocation8 + $0xe0] sm:$0xff]
        %v607 = vld [vmem:[#allocation8 + $0xe8] sm:$0xff]
        %v608 = vld [vmem:[#allocation8 + $0xf0] sm:$0xff]
        %v609 = vld [vmem:[#allocation8 + $0xf8] sm:$0xff]
        %v610 = vld [vmem:[#allocation8 + $0x100] sm:$0xff]
        %v611 = vld [vmem:[#allocation8 + $0x108] sm:$0xff]
        %v612 = vld [vmem:[#allocation8 + $0x110] sm:$0xff]
        %v613 = vld [vmem:[#allocation8 + $0x118] sm:$0xff]
        %v614 = vld [vmem:[#allocation8 + $0x120] sm:$0xff]
        %v615 = vld [vmem:[#allocation8 + $0x128] sm:$0xff]
        %v616 = vld [vmem:[#allocation8 + $0x130] sm:$0xff]
        %v617 = vld [vmem:[#allocation8 + $0x138] sm:$0xff]
        %v618 = vld [vmem:[#allocation8 + $0x140] sm:$0xff]
        %v619 = vld [vmem:[#allocation8 + $0x148] sm:$0xff]
        %v620 = vld [vmem:[#allocation8 + $0x150] sm:$0xff]
        %v621 = vld [vmem:[#allocation8 + $0x158] sm:$0xff]
        %v622 = vld [vmem:[#allocation8 + $0x160] sm:$0xff]
        %v623 = vld [vmem:[#allocation8 + $0x168] sm:$0xff]
        %v624 = vld [vmem:[#allocation8 + $0x170] sm:$0xff]
        %v625 = vld [vmem:[#allocation8 + $0x178] sm:$0xff]
        %626 = vmatprep.subr.mxu0 0.0
        %627 = vmatpush1.msra.mxu0 %v578
        %628 = vmatprep.subr.mxu0 0.0
        %629 = vmatpush1.msra.mxu0 %v579
        %630 = vmatprep.subr.mxu0 0.0
        %631 = vmatpush1.msra.mxu0 %v580
        %632 = vmatprep.subr.mxu0 0.0
        %633 = vmatpush1.msra.mxu0 %v581
        %634 = vmatprep.subr.mxu0 0.0
        %635 = vmatpush1.msra.mxu0 %v582
        %636 = vmatprep.subr.mxu0 0.0
        %637 = vmatpush1.msra.mxu0 %v583
        %638 = vmatprep.subr.mxu0 0.0
        %639 = vmatpush1.msra.mxu0 %v584
        %640 = vmatprep.subr.mxu0 0.0
        %641 = vmatpush1.msra.mxu0 %v585
        %642 = vmatprep.subr.mxu0 0.0
        %643 = vmatpush1.msra.mxu0 %v586
        %644 = vmatprep.subr.mxu0 0.0
        %645 = vmatpush1.msra.mxu0 %v587
        %646 = vmatprep.subr.mxu0 0.0
        %647 = vmatpush1.msra.mxu0 %v588
        %648 = vmatprep.subr.mxu0 0.0
        %649 = vmatpush1.msra.mxu0 %v589
        %650 = vmatprep.subr.mxu0 0.0
        %651 = vmatpush1.msra.mxu0 %v590
        %652 = vmatprep.subr.mxu0 0.0
        %653 = vmatpush1.msra.mxu0 %v591
        %654 = vmatprep.subr.mxu0 0.0
        %655 = vmatpush1.msra.mxu0 %v592
        %656 = vmatprep.subr.mxu0 0.0
        %657 = vmatpush1.msra.mxu0 %v593
        %658 = vmatprep.subr.mxu0 0.0
        %659 = vmatpush1.msra.mxu0 %v594
        %660 = vmatprep.subr.mxu0 0.0
        %661 = vmatpush1.msra.mxu0 %v595
        %662 = vmatprep.subr.mxu0 0.0
        %663 = vmatpush1.msra.mxu0 %v596
        %664 = vmatprep.subr.mxu0 0.0
        %665 = vmatpush1.msra.mxu0 %v597
        %666 = vmatprep.subr.mxu0 0.0
        %667 = vmatpush1.msra.mxu0 %v598
        %668 = vmatprep.subr.mxu0 0.0
        %669 = vmatpush1.msra.mxu0 %v599
        %670 = vmatprep.subr.mxu0 0.0
        %671 = vmatpush1.msra.mxu0 %v600
        %672 = vmatprep.subr.mxu0 0.0
        %673 = vmatpush1.msra.mxu0 %v601
        %674 = vmatprep.subr.mxu0 0.0
        %675 = vmatpush1.msra.mxu0 %v602
        %676 = vmatprep.subr.mxu0 0.0
        %677 = vmatpush1.msra.mxu0 %v603
        %678 = vmatprep.subr.mxu0 0.0
        %679 = vmatpush1.msra.mxu0 %v604
        %680 = vmatprep.subr.mxu0 0.0
        %681 = vmatpush1.msra.mxu0 %v605
        %682 = vmatprep.subr.mxu0 0.0
        %683 = vmatpush1.msra.mxu0 %v606
        %684 = vmatprep.subr.mxu0 0.0
        %685 = vmatpush1.msra.mxu0 %v607
        %686 = vmatprep.subr.mxu0 0.0
        %687 = vmatpush1.msra.mxu0 %v608
        %688 = vmatprep.subr.mxu0 0.0
        %689 = vmatpush1.msra.mxu0 %v609
        %690 = vmatprep.mubr.f32.mxu0 %v563
        %691 = vmatmul.mubr.f32.gmra.mrb[0].mxu0 %v554
        %v692 = vpop.f32.mrb[0].mxu0
        %v693 = vadd.f32 0.0, %v692
        %v694 = vpop.f32.mrb[0].mxu0
        %695 = vmatprep.mubr.f32.mxu0 %v565
        %696 = vmatmul.mubr.f32.gmra.mrb[0].mxu0 %v555
        %v697 = vpop.f32.mrb[0].mxu0
        %v698 = vadd.f32 0.0, %v697
        %v699 = vpop.f32.mrb[0].mxu0
        %700 = vmatprep.mubr.f32.mxu0 %v564
        %701 = vmatmul.mubr.f32.gmra.mrb[0].mxu0 %v556
        %v702 = vpop.f32.mrb[0].mxu0
        %v703 = vadd.f32 0.0, %v702
        %v704 = vpop.f32.mrb[0].mxu0
        %705 = vdwg.mxu0
        %706 = vmatprep.subr.mxu0 0.0
        %707 = vmatpush1.msra.mxu0 %v610
        %708 = vmatprep.subr.mxu0 0.0
        %709 = vmatpush1.msra.mxu0 %v611
        %710 = vmatprep.subr.mxu0 0.0
        %711 = vmatpush1.msra.mxu0 %v612
        %712 = vmatprep.subr.mxu0 0.0
        %713 = vmatpush1.msra.mxu0 %v613
        %714 = vmatprep.subr.mxu0 0.0
        %715 = vmatpush1.msra.mxu0 %v614
        %716 = vmatprep.subr.mxu0 0.0
        %717 = vmatpush1.msra.mxu0 %v615
        %718 = vmatprep.subr.mxu0 0.0
        %719 = vmatpush1.msra.mxu0 %v616
        %720 = vmatprep.subr.mxu0 0.0
        %721 = vmatpush1.msra.mxu0 %v617
        %722 = vmatprep.subr.mxu0 0.0
        %723 = vmatpush1.msra.mxu0 %v618
        %724 = vmatprep.subr.mxu0 0.0
        %725 = vmatpush1.msra.mxu0 %v619
        %726 = vmatprep.subr.mxu0 0.0
        %727 = vmatpush1.msra.mxu0 %v620
        %728 = vmatprep.subr.mxu0 0.0
        %729 = vmatpush1.msra.mxu0 %v621
        %730 = vmatprep.subr.mxu0 0.0
        %731 = vmatpush1.msra.mxu0 %v622
        %732 = vmatprep.subr.mxu0 0.0
        %733 = vmatpush1.msra.mxu0 %v623
        %734 = vmatprep.subr.mxu0 0.0
        %735 = vmatpush1.msra.mxu0 %v624
        %736 = vmatprep.subr.mxu0 0.0
        %737 = vmatpush1.msra.mxu0 %v625
        %738 = vmatprep.subr.mxu0 0.0
        %739 = vmatpush1.msra.mxu0 0.0
        %740 = vmatprep.subr.mxu0 0.0
        %741 = vmatpush1.msra.mxu0 0.0
        %742 = vmatprep.subr.mxu0 0.0
        %743 = vmatpush1.msra.mxu0 0.0
        %744 = vmatprep.subr.mxu0 0.0
        %745 = vmatpush1.msra.mxu0 0.0
        %746 = vmatprep.subr.mxu0 0.0
        %747 = vmatpush1.msra.mxu0 0.0
        %748 = vmatprep.subr.mxu0 0.0
        %749 = vmatpush1.msra.mxu0 0.0
        %750 = vmatprep.subr.mxu0 0.0
        %751 = vmatpush1.msra.mxu0 0.0
        %752 = vmatprep.subr.mxu0 0.0
        %753 = vmatpush1.msra.mxu0 0.0
        %754 = vmatprep.subr.mxu0 0.0
        %755 = vmatpush1.msra.mxu0 0.0
        %756 = vmatprep.subr.mxu0 0.0
        %757 = vmatpush1.msra.mxu0 0.0
        %758 = vmatprep.subr.mxu0 0.0
        %759 = vmatpush1.msra.mxu0 0.0
        %760 = vmatprep.subr.mxu0 0.0
        %761 = vmatpush1.msra.mxu0 0.0
        %762 = vmatprep.subr.mxu0 0.0
        %763 = vmatpush1.msra.mxu0 0.0
        %764 = vmatprep.subr.mxu0 0.0
        %765 = vmatpush1.msra.mxu0 0.0
        %766 = vmatprep.subr.mxu0 0.0
        %767 = vmatpush1.msra.mxu0 0.0
        %768 = vmatprep.subr.mxu0 0.0
        %769 = vmatpush1.msra.mxu0 0.0
        %770 = vmatprep.mubr.f32.mxu0 0.0
        %771 = vmatmul.mubr.f32.gmra.mrb[0].mxu0 %v572
        %v772 = vpop.f32.mrb[0].mxu0
        %v773 = vadd.f32 %v693, %v772
        %v774 = vpop.f32.mrb[0].mxu0
        %775 = vmatprep.mubr.f32.mxu0 0.0
        %776 = vmatmul.mubr.f32.gmra.mrb[0].mxu0 %v574
        %v777 = vpop.f32.mrb[0].mxu0
        %v778 = vadd.f32 %v698, %v777
        %v779 = vpop.f32.mrb[0].mxu0
        %780 = vmatprep.mubr.f32.mxu0 0.0
        %781 = vmatmul.mubr.f32.gmra.mrb[0].mxu0 %v573
        %v782 = vpop.f32.mrb[0].mxu0
        %v783 = vadd.f32 %v703, %v782
        %v784 = vpop.f32.mrb[0].mxu0
        %785 = vdwg.mxu0
        %v786 = vld [vmem:[%s5] sm:$0x1]
        %v788 = vlaneseq
        %v789 = vshrl.u32 %v788, 7
        %v790 = vsub.s32 0, %v789
        %v791 = vrot.slane %v786, %v790
        %v793 = vmul.f32 %v773, %v791
        %v794 = vmul.f32 %v778, %v791
        %v795 = vmul.f32 %v783, %v791
        %v796 = vld [vmem:[%s6] sm:$0x1]
        %v798 = vlaneseq
        %v799 = vshrl.u32 %v798, 7
        %v800 = vsub.s32 0, %v799
        %v801 = vrot.slane %v796, %v800
        %v803 = vadd.f32 %v793, %v801
        %v804 = vadd.f32 %v794, %v801
        %v805 = vadd.f32 %v795, %v801
        %v806 = vmax.f32 %v803, 0.0
        %v807 = vmax.f32 %v804, 0.0
        %v808 = vmax.f32 %v805, 0.0
        %s809 = ssub.s32 %s511, 1
        %v810 = vstv %s809
        %v811 = vadd.s32 %v531, %v810
        %v812 = vadd.s32 %v532, %v810
        %v813 = vadd.s32 %v533, %v810
        %vm814 = vcmp.ge.s32.totalorder %v811, 0
        %vm815 = vcmp.ge.s32.totalorder %v812, 0
        %vm816 = vcmp.ge.s32.totalorder %v813, 0
        %vm817 = vcmp.lt.s32.totalorder %v811, 16
        %vm818 = vcmp.lt.s32.totalorder %v812, 16
        %vm819 = vcmp.lt.s32.totalorder %v813, 16
        %vm820 = vmand %vm814, %vm817
        %vm821 = vmand %vm815, %vm818
        %vm822 = vmand %vm816, %vm819
        %v823 = vsel %vm820, 1, 0
        %v824 = vsel %vm821, 1, 0
        %v825 = vsel %vm822, 1, 0
        %vm826 = vcmp.eq.s32.totalorder %v823, 1
        %vm827 = vcmp.eq.s32.totalorder %v824, 1
        %vm828 = vcmp.eq.s32.totalorder %v825, 1
        %v829 = vsel %vm826, %v806, 0.0
        %v830 = vsel %vm827, %v807, 0.0
        %v831 = vsel %vm828, %v808, 0.0
        %v835 = vrot.slane %v829, 1
        %v836 = vrot.slane %v830, 1
        %v837 = vsel %vm560, %v835, %v836
        %v838 = vrot.slane %v831, 1
        %v839 = vsel %vm560, %v836, %v838
        %v842 = vrot.slane %v829, 2
        %v843 = vrot.slane %v830, 2
        %v844 = vsel %vm569, %v842, %v843
        %v845 = vrot.slane %v831, 2
        %v846 = vsel %vm569, %v843, %v845
        %v849 = vld [vmem:[#allocation10] sm:$0xff]
        %v850 = vld [vmem:[#allocation10 + $0x8] sm:$0xff]
        %v851 = vld [vmem:[#allocation10 + $0x10] sm:$0xff]
        %v852 = vld [vmem:[#allocation10 + $0x18] sm:$0xff]
        %v853 = vld [vmem:[#allocation10 + $0x20] sm:$0xff]
        %v854 = vld [vmem:[#allocation10 + $0x28] sm:$0xff]
        %v855 = vld [vmem:[#allocation10 + $0x30] sm:$0xff]
        %v856 = vld [vmem:[#allocation10 + $0x38] sm:$0xff]
        %v857 = vld [vmem:[#allocation10 + $0x40] sm:$0xff]
        %v858 = vld [vmem:[#allocation10 + $0x48] sm:$0xff]
        %v859 = vld [vmem:[#allocation10 + $0x50] sm:$0xff]
        %v860 = vld [vmem:[#allocation10 + $0x58] sm:$0xff]
        %v861 = vld [vmem:[#allocation10 + $0x60] sm:$0xff]
        %v862 = vld [vmem:[#allocation10 + $0x68] sm:$0xff]
        %v863 = vld [vmem:[#allocation10 + $0x70] sm:$0xff]
        %v864 = vld [vmem:[#allocation10 + $0x78] sm:$0xff]
        %v865 = vld [vmem:[#allocation10 + $0x80] sm:$0xff]
        %v866 = vld [vmem:[#allocation10 + $0x88] sm:$0xff]
        %v867 = vld [vmem:[#allocation10 + $0x90] sm:$0xff]
        %v868 = vld [vmem:[#allocation10 + $0x98] sm:$0xff]
        %v869 = vld [vmem:[#allocation10 + $0xa0] sm:$0xff]
        %v870 = vld [vmem:[#allocation10 + $0xa8] sm:$0xff]
        %v871 = vld [vmem:[#allocation10 + $0xb0] sm:$0xff]
        %v872 = vld [vmem:[#allocation10 + $0xb8] sm:$0xff]
        %v873 = vld [vmem:[#allocation10 + $0xc0] sm:$0xff]
        %v874 = vld [vmem:[#allocation10 + $0xc8] sm:$0xff]
        %v875 = vld [vmem:[#allocation10 + $0xd0] sm:$0xff]
        %v876 = vld [vmem:[#allocation10 + $0xd8] sm:$0xff]
        %v877 = vld [vmem:[#allocation10 + $0xe0] sm:$0xff]
        %v878 = vld [vmem:[#allocation10 + $0xe8] sm:$0xff]
        %v879 = vld [vmem:[#allocation10 + $0xf0] sm:$0xff]
        %v880 = vld [vmem:[#allocation10 + $0xf8] sm:$0xff]
        %v881 = vld [vmem:[#allocation10 + $0x100] sm:$0xff]
        %v882 = vld [vmem:[#allocation10 + $0x108] sm:$0xff]
        %v883 = vld [vmem:[#allocation10 + $0x110] sm:$0xff]
        %v884 = vld [vmem:[#allocation10 + $0x118] sm:$0xff]
        %v885 = vld [vmem:[#allocation10 + $0x120] sm:$0xff]
        %v886 = vld [vmem:[#allocation10 + $0x128] sm:$0xff]
        %v887 = vld [vmem:[#allocation10 + $0x130] sm:$0xff]
        %v888 = vld [vmem:[#allocation10 + $0x138] sm:$0xff]
        %v889 = vld [vmem:[#allocation10 + $0x140] sm:$0xff]
        %v890 = vld [vmem:[#allocation10 + $0x148] sm:$0xff]
        %v891 = vld [vmem:[#allocation10 + $0x150] sm:$0xff]
        %v892 = vld [vmem:[#allocation10 + $0x158] sm:$0xff]
        %v893 = vld [vmem:[#allocation10 + $0x160] sm:$0xff]
        %v894 = vld [vmem:[#allocation10 + $0x168] sm:$0xff]
        %v895 = vld [vmem:[#allocation10 + $0x170] sm:$0xff]
        %v896 = vld [vmem:[#allocation10 + $0x178] sm:$0xff]
        %897 = vmatprep.subr.mxu0 0.0
        %898 = vmatpush1.msra.mxu0 %v849
        %899 = vmatprep.subr.mxu0 0.0
        %900 = vmatpush1.msra.mxu0 %v850
        %901 = vmatprep.subr.mxu0 0.0
        %902 = vmatpush1.msra.mxu0 %v851
        %903 = vmatprep.subr.mxu0 0.0
        %904 = vmatpush1.msra.mxu0 %v852
        %905 = vmatprep.subr.mxu0 0.0
        %906 = vmatpush1.msra.mxu0 %v853
        %907 = vmatprep.subr.mxu0 0.0
        %908 = vmatpush1.msra.mxu0 %v854
        %909 = vmatprep.subr.mxu0 0.0
        %910 = vmatpush1.msra.mxu0 %v855
        %911 = vmatprep.subr.mxu0 0.0
        %912 = vmatpush1.msra.mxu0 %v856
        %913 = vmatprep.subr.mxu0 0.0
        %914 = vmatpush1.msra.mxu0 %v857
        %915 = vmatprep.subr.mxu0 0.0
        %916 = vmatpush1.msra.mxu0 %v858
        %917 = vmatprep.subr.mxu0 0.0
        %918 = vmatpush1.msra.mxu0 %v859
        %919 = vmatprep.subr.mxu0 0.0
        %920 = vmatpush1.msra.mxu0 %v860
        %921 = vmatprep.subr.mxu0 0.0
        %922 = vmatpush1.msra.mxu0 %v861
        %923 = vmatprep.subr.mxu0 0.0
        %924 = vmatpush1.msra.mxu0 %v862
        %925 = vmatprep.subr.mxu0 0.0
        %926 = vmatpush1.msra.mxu0 %v863
        %927 = vmatprep.subr.mxu0 0.0
        %928 = vmatpush1.msra.mxu0 %v864
        %929 = vmatprep.subr.mxu0 0.0
        %930 = vmatpush1.msra.mxu0 %v865
        %931 = vmatprep.subr.mxu0 0.0
        %932 = vmatpush1.msra.mxu0 %v866
        %933 = vmatprep.subr.mxu0 0.0
        %934 = vmatpush1.msra.mxu0 %v867
        %935 = vmatprep.subr.mxu0 0.0
        %936 = vmatpush1.msra.mxu0 %v868
        %937 = vmatprep.subr.mxu0 0.0
        %938 = vmatpush1.msra.mxu0 %v869
        %939 = vmatprep.subr.mxu0 0.0
        %940 = vmatpush1.msra.mxu0 %v870
        %941 = vmatprep.subr.mxu0 0.0
        %942 = vmatpush1.msra.mxu0 %v871
        %943 = vmatprep.subr.mxu0 0.0
        %944 = vmatpush1.msra.mxu0 %v872
        %945 = vmatprep.subr.mxu0 0.0
        %946 = vmatpush1.msra.mxu0 %v873
        %947 = vmatprep.subr.mxu0 0.0
        %948 = vmatpush1.msra.mxu0 %v874
        %949 = vmatprep.subr.mxu0 0.0
        %950 = vmatpush1.msra.mxu0 %v875
        %951 = vmatprep.subr.mxu0 0.0
        %952 = vmatpush1.msra.mxu0 %v876
        %953 = vmatprep.subr.mxu0 0.0
        %954 = vmatpush1.msra.mxu0 %v877
        %955 = vmatprep.subr.mxu0 0.0
        %956 = vmatpush1.msra.mxu0 %v878
        %957 = vmatprep.subr.mxu0 0.0
        %958 = vmatpush1.msra.mxu0 %v879
        %959 = vmatprep.subr.mxu0 0.0
        %960 = vmatpush1.msra.mxu0 %v880
        %961 = vmatprep.mubr.f32.mxu0 %v837
        %962 = vmatmul.mubr.f32.gmra.mrb[0].mxu0 %v829
        %v963 = vpop.f32.mrb[0].mxu0
        %v964 = vadd.f32 0.0, %v963
        %v965 = vpop.f32.mrb[0].mxu0
        %966 = vmatprep.mubr.f32.mxu0 %v839
        %967 = vmatmul.mubr.f32.gmra.mrb[0].mxu0 %v830
        %v968 = vpop.f32.mrb[0].mxu0
        %v969 = vadd.f32 0.0, %v968
        %v970 = vpop.f32.mrb[0].mxu0
        %971 = vdwg.mxu0
        %972 = vmatprep.subr.mxu0 0.0
        %973 = vmatpush1.msra.mxu0 %v881
        %974 = vmatprep.subr.mxu0 0.0
        %975 = vmatpush1.msra.mxu0 %v882
        %976 = vmatprep.subr.mxu0 0.0
        %977 = vmatpush1.msra.mxu0 %v883
        %978 = vmatprep.subr.mxu0 0.0
        %979 = vmatpush1.msra.mxu0 %v884
        %980 = vmatprep.subr.mxu0 0.0
        %981 = vmatpush1.msra.mxu0 %v885
        %982 = vmatprep.subr.mxu0 0.0
        %983 = vmatpush1.msra.mxu0 %v886
        %984 = vmatprep.subr.mxu0 0.0
        %985 = vmatpush1.msra.mxu0 %v887
        %986 = vmatprep.subr.mxu0 0.0
        %987 = vmatpush1.msra.mxu0 %v888
        %988 = vmatprep.subr.mxu0 0.0
        %989 = vmatpush1.msra.mxu0 %v889
        %990 = vmatprep.subr.mxu0 0.0
        %991 = vmatpush1.msra.mxu0 %v890
        %992 = vmatprep.subr.mxu0 0.0
        %993 = vmatpush1.msra.mxu0 %v891
        %994 = vmatprep.subr.mxu0 0.0
        %995 = vmatpush1.msra.mxu0 %v892
        %996 = vmatprep.subr.mxu0 0.0
        %997 = vmatpush1.msra.mxu0 %v893
        %998 = vmatprep.subr.mxu0 0.0
        %999 = vmatpush1.msra.mxu0 %v894
        %1000 = vmatprep.subr.mxu0 0.0
        %1001 = vmatpush1.msra.mxu0 %v895
        %1002 = vmatprep.subr.mxu0 0.0
        %1003 = vmatpush1.msra.mxu0 %v896
        %1004 = vmatprep.subr.mxu0 0.0
        %1005 = vmatpush1.msra.mxu0 0.0
        %1006 = vmatprep.subr.mxu0 0.0
        %1007 = vmatpush1.msra.mxu0 0.0
        %1008 = vmatprep.subr.mxu0 0.0
        %1009 = vmatpush1.msra.mxu0 0.0
        %1010 = vmatprep.subr.mxu0 0.0
        %1011 = vmatpush1.msra.mxu0 0.0
        %1012 = vmatprep.subr.mxu0 0.0
        %1013 = vmatpush1.msra.mxu0 0.0
        %1014 = vmatprep.subr.mxu0 0.0
        %1015 = vmatpush1.msra.mxu0 0.0
        %1016 = vmatprep.subr.mxu0 0.0
        %1017 = vmatpush1.msra.mxu0 0.0
        %1018 = vmatprep.subr.mxu0 0.0
        %1019 = vmatpush1.msra.mxu0 0.0
        %1020 = vmatprep.subr.mxu0 0.0
        %1021 = vmatpush1.msra.mxu0 0.0
        %1022 = vmatprep.subr.mxu0 0.0
        %1023 = vmatpush1.msra.mxu0 0.0
        %1024 = vmatprep.subr.mxu0 0.0
        %1025 = vmatpush1.msra.mxu0 0.0
        %1026 = vmatprep.subr.mxu0 0.0
        %1027 = vmatpush1.msra.mxu0 0.0
        %1028 = vmatprep.subr.mxu0 0.0
        %1029 = vmatpush1.msra.mxu0 0.0
        %1030 = vmatprep.subr.mxu0 0.0
        %1031 = vmatpush1.msra.mxu0 0.0
        %1032 = vmatprep.subr.mxu0 0.0
        %1033 = vmatpush1.msra.mxu0 0.0
        %1034 = vmatprep.subr.mxu0 0.0
        %1035 = vmatpush1.msra.mxu0 0.0
        %1036 = vmatprep.mubr.f32.mxu0 0.0
        %1037 = vmatmul.mubr.f32.gmra.mrb[0].mxu0 %v844
        %v1038 = vpop.f32.mrb[0].mxu0
        %v1039 = vadd.f32 %v964, %v1038
        %v1040 = vpop.f32.mrb[0].mxu0
        %1041 = vmatprep.mubr.f32.mxu0 0.0
        %1042 = vmatmul.mubr.f32.gmra.mrb[0].mxu0 %v846
        %v1043 = vpop.f32.mrb[0].mxu0
        %v1044 = vadd.f32 %v969, %v1043
        %v1045 = vpop.f32.mrb[0].mxu0
        %1046 = vdwg.mxu0
        %v1047 = vld [vmem:[%s7] sm:$0x1]
        %v1049 = vlaneseq
        %v1050 = vshrl.u32 %v1049, 7
        %v1051 = vsub.s32 0, %v1050
        %v1052 = vrot.slane %v1047, %v1051
        %v1054 = vmul.f32 %v1039, %v1052
        %v1055 = vmul.f32 %v1044, %v1052
        %v1056 = vld [vmem:[%s8] sm:$0x1]
        %v1058 = vlaneseq
        %v1059 = vshrl.u32 %v1058, 7
        %v1060 = vsub.s32 0, %v1059
        %v1061 = vrot.slane %v1056, %v1060
        %v1063 = vadd.f32 %v1054, %v1061
        %v1064 = vadd.f32 %v1055, %v1061
        %v1065 = vadd.f32 %v1063, %v572
        %v1066 = vadd.f32 %v1064, %v574
        %v1067 = vmax.f32 %v1065, 0.0
        %v1068 = vmax.f32 %v1066, 0.0
        %1069 = vst [vmem:[%s500] sm:$0xff] %v1067
        %1070 = vst [vmem:[%s500 + $0x8] sm:$0xff] %v1068
        %s1071 = sand.u32 %s278, 1
        %s1072 = scalar_lea.sflag [#allocation4], %s1071
        %s1073 = sand.u32 %s278, 1
        %s1074 = smul.addr %s1073, 16
        %s1075 = scalar_lea.vmem [#allocation11], %s1074
        // Predicated region
        $region77: #{tpu_custom_call.1} parent=55 // pred_check
          %p1076 = pneg %p288
        $region78: #{tpu_custom_call.1} parent=55 // pred_check_branch
          %1078 = sbr.rel (%p1076) target = $region80
        $region79: #{tpu_custom_call.1} parent=55 // pred_region
          %s1079 = smul.u32 2, %s35
          %s1081 = ssub.s32 256, 256
          %1082 = vsyncadd %s1072, %s1081
          %s1083 = smul.addr %s34, 2
          %s1084 = sadd.s32 %s1079, %s1083
          %s1085 = smul.addr %s1084, 128
          %s1086 = scalar_lea.hbm %s9, %s1085
          %s1087 = sshll.u32 %s1075, 4
          %s1088 = int_to_ptr.vmem [resolvable:$true] %s1087
          %1093 = dma.vmem_to_hbm [thread:$0]  %s1088, 256, %s1086, %s1072, 128, 128, 8
        $region80: #{tpu_custom_call.1} parent=55 // pred_fallthru
          _
      $region56: #{tpu_custom_call.1} parent=5 // pred_fallthru
        _
      %p1094 = scmp.le.s32.totalorder 2, %s25
      // Predicated region
      $region81: #{tpu_custom_call.1} parent=5 // pred_check
        %p1095 = pneg %p1094
      $region82: #{tpu_custom_call.1} parent=5 // pred_check_branch
        %1097 = sbr.rel (%p1095) target = $region84
      $region83: #{tpu_custom_call.1} parent=5 // pred_region
        %s1098 = ssub.s32 %s25, 2
        // Predicated region
        $region85: #{tpu_custom_call.1} parent=83 // pred_check
          %p1099 = pneg %p294
        $region86: #{tpu_custom_call.1} parent=83 // pred_check_branch
          %1101 = sbr.rel (%p1099) target = $region88
        $region87: #{tpu_custom_call.1} parent=83 // pred_region
          %s1102 = sand.u32 %s279, 1
          %s1103 = scalar_lea.sflag [#allocation4], %s1102
          %s1104 = sand.u32 %s279, 1
          %s1105 = smul.addr %s1104, 16
          %s1106 = scalar_lea.vmem [#allocation11], %s1105
          %1107 = dma.done %s1103, 256
        $region88: #{tpu_custom_call.1} parent=83 // pred_fallthru
          _
      $region84: #{tpu_custom_call.1} parent=5 // pred_fallthru
        _
    $region6: #{tpu_custom_call.1} parent=1 // loop_footer
      %s29 = sadd.s32 1, %s25
    $region7: #{tpu_custom_call.1} parent=1 // loop_footer_branch
      %24 = sbr.rel target = $region3
    $region8: #{tpu_custom_call.1} parent=1 // loop_exit
      _
    %1108 = vsyncpa [#allocation3], 1
    %s1109 = scalar_lea.sflag [#allocation3], 1
    %1110 = vsyncpa %s1109, 1
    %1111 = vsyncpa [#allocation6], 1
    %s1112 = scalar_lea.sflag [#allocation6], 1
    %1113 = vsyncpa %s1112, 1
    %1114 = vsyncpa [#allocation9], 1
    %1115 = vsyncpa [#allocation4], 1
    %s1116 = scalar_lea.sflag [#allocation4], 1
    %1117 = vsyncpa %s1116, 1

</llo_original>
